<compile_context>
chip_gen: v7x
topology: tpu7x:2x2x1
jax: 0.10.0
libtpu: 0.0.40
codegen_flags: <defaults>
</compile_context>

<pallas_src>
import numpy as np
import jax
import jax.numpy as jnp
from jax.experimental import pallas as pl
from jax.experimental.pallas import tpu as pltpu


def build_mask3d(seq_len, max_len):
    # Exact copy of the reference helper (mask shape: (max_len, batch, 1)).
    mask = np.zeros((int(max_len), len(seq_len), 1))
    for i, s in enumerate(seq_len):
        if int(s) <= -1:
            mask[0, i] = 1
        elif int(s) == 0:
            mask[:2, i] = np.ones((2, 1))
        elif int(s) > 0:
            mask[:int(s), i] = np.ones((int(s), 1))
    return mask


def fused_cnn_embed_kernel(x_ref, w_ref, r_ref, o_ref):
    """Fused Conv1d(valid) + tanh + masked mean for title AND body.

    x_ref: (M, KC+1)  im2col-packed title+body rows (padded rows are zeroed by
                      the reduction weights), last column is ones (bias fold).
    w_ref: (KC+1, H)  conv weight rows (tap*C_in + chan) plus bias as last row.
    r_ref: (B, M)     block-structured reduction weights = mask * 0.5 / den,
                      title block then body block per batch row.
    o_ref: (B, H)     (title_emb + body_emb) / 2
    """
    # Conv (im2col matmul, bias folded) + tanh.  Dropout(p=0.2) is identity in eval.
    y = jnp.tanh(jnp.dot(x_ref[...], w_ref[...],
                         preferred_element_type=jnp.float32))        # (M, H)
    # Masked mean + /den + final /2 + title/body add, all as one MXU contraction.
    o_ref[...] = jnp.dot(r_ref[...], y,
                         preferred_element_type=jnp.float32)          # (B, H)


def _im2col_pad(x, K, L_max):
    """(B, L, C) -> (B*L_max, K*C) tap-major packed rows, zero-padded to L_max."""
    B, L, C = x.shape
    L_out = L - K + 1
    xi = jnp.concatenate([x[:, j:j + L_out, :] for j in range(K)], axis=-1)
    xi = jnp.pad(xi, ((0, 0), (0, L_max - L_out), (0, 0)))
    return xi.reshape(B * L_max, K * C)


def pack_inputs(title, body, K):
    """Host-side (XLA) packing: title+body im2col, padded, ones column appended."""
    assert title.shape[1] >= K and body.shape[1] >= K, "seq_len must be >= kernel_size"
    L_max = max(title.shape[1], body.shape[1]) - K + 1
    xt = _im2col_pad(title, K, L_max)                      # (B*L_max, K*C)
    xb = _im2col_pad(body, K, L_max)                       # (B*L_max, K*C)
    x = jnp.concatenate([xt, xb], axis=0)                  # (2*B*L_max, K*C)
    ones = jnp.ones((x.shape[0], 1), x.dtype)              # bias fold column
    return jnp.concatenate([x, ones], axis=-1), L_max      # (M, K*C + 1)


def build_reduce_weights(t_mask_np, b_mask_np, B, L_max):
    """(B, 2*B*L_max) block reduction matrix: mask * (0.5 / den) per text/batch."""
    M = 2 * B * L_max
    w_red = np.zeros((B, M), np.float32)
    for b in range(B):
        tm = t_mask_np[:, b, 0]
        bm = b_mask_np[:, b, 0]
        w_red[b, b * L_max: b * L_max + tm.shape[0]] = tm * (0.5 / tm.sum())
        off = B * L_max
        w_red[b, off + b * L_max: off + b * L_max + bm.shape[0]] = bm * (0.5 / bm.sum())
    return jnp.asarray(w_red)


def cnn_embedding_forward(x_packed, w_aug, w_reduce):
    """Single gridless pallas_call: 3 tiny VMEM-resident inputs, one (B, H) output."""
    B = w_reduce.shape[0]
    H = w_aug.shape[1]
    vmem = pltpu.MemorySpace.VMEM
    return pl.pallas_call(
        fused_cnn_embed_kernel,
        out_shape=jax.ShapeDtypeStruct((B, H), jnp.float32),
        in_specs=[pl.BlockSpec(memory_space=vmem)] * 3,
        out_specs=pl.BlockSpec(memory_space=vmem),
    )(x_packed, w_aug, w_reduce)


if __name__ == "__main__":
    B, C_in, H, K = 2, 8, 32, 3          # batch, input_size, hidden_size, kernel_size
    L_title, L_body = 16, 12

    key = jax.random.PRNGKey(0)
    k1, k2, k3, k4 = jax.random.split(key, 4)

    # Deterministic synthetic inputs (title/body: (B, L, C_in)).
    title = jax.random.normal(k1, (B, L_title, C_in), jnp.float32)
    body = jax.random.normal(k2, (B, L_body, C_in), jnp.float32)
    title_len = np.array([16, 10])
    body_len = np.array([12, 7])
    # The reference implicitly requires max(len) == L (mask/out broadcast).
    assert int(np.max(title_len)) == L_title and int(np.max(body_len)) == L_body

    # Deterministic Conv1d parameters (PyTorch layout: weight (H, C_in, K), bias (H,)).
    W = 0.1 * jax.random.normal(k3, (H, C_in, K), jnp.float32)
    bvec = 0.1 * jax.random.normal(k4, (H,), jnp.float32)

    # Masks exactly as the module builds them for the cnn branch: (L_out, B, 1).
    t_mask_np = build_mask3d(title_len - K + 1, np.max(title_len) - K + 1)
    b_mask_np = build_mask3d(body_len - K + 1, np.max(body_len) - K + 1)
    assert t_mask_np.shape[0] == L_title - K + 1 and b_mask_np.shape[0] == L_body - K + 1

    # Host-side packing of all operands (review items 1-4).
    x_packed, L_max = pack_inputs(title, body, K)                    # (M, K*C+1)
    w_im2col = jnp.transpose(W, (2, 1, 0)).reshape(K * C_in, H)      # (K*C, H)
    w_aug = jnp.concatenate([w_im2col, bvec[None, :]], axis=0)       # (K*C+1, H)
    w_reduce = build_reduce_weights(t_mask_np, b_mask_np, B, L_max)  # (B, M)

    embeddings = cnn_embedding_forward(x_packed, w_aug, w_reduce)
    embeddings = jax.block_until_ready(embeddings)

    # Pure-JAX reference for correctness (same math, plain jnp).
    def ref_embed(x, mask_np):
        L = x.shape[1]
        L_out = L - K + 1
        out = jnp.zeros((B, L_out, H), jnp.float32)
        for j in range(K):
            out = out + jnp.einsum('blc,hc->blh', x[:, j:j + L_out, :], W[:, :, j])
        y = jnp.tanh(out + bvec)
        m = jnp.asarray(np.transpose(mask_np, (1, 0, 2)).astype(np.float32))  # (B, L_out, 1)
        return jnp.sum(y * m, axis=1) / jnp.sum(m, axis=1)

    ref = (ref_embed(title, t_mask_np) + ref_embed(body, b_mask_np)) / 2.0

    assert embeddings.shape == (B, H)
    np.testing.assert_allclose(np.asarray(embeddings), np.asarray(ref),
                               rtol=1e-5, atol=1e-5)
    print("KERNEL_OK")
</pallas_src>

<mosaic_0001>
module attributes {stable_mosaic.version = 11 : i64} {
  func.func @fused_cnn_embed_kernel(%arg0: memref<56x25xf32, #tpu.memory_space<vmem>>, %arg1: memref<25x32xf32, #tpu.memory_space<vmem>>, %arg2: memref<2x56xf32, #tpu.memory_space<vmem>>, %arg3: memref<2x32xf32, #tpu.memory_space<vmem>>) attributes {dimension_semantics = [], scalar_prefetch = 0 : i64, scratch_operands = 0 : i64, tpu.core_type = #tpu.core_type<tc>} {
    %c0 = arith.constant 0 : index
    %c0_0 = arith.constant 0 : index
    %0 = vector.load %arg0[%c0, %c0_0] : memref<56x25xf32, #tpu.memory_space<vmem>>, vector<56x25xf32>
    %c0_1 = arith.constant 0 : index
    %c0_2 = arith.constant 0 : index
    %1 = vector.load %arg1[%c0_1, %c0_2] : memref<25x32xf32, #tpu.memory_space<vmem>>, vector<25x32xf32>
    %cst = arith.constant dense<0.000000e+00> : vector<56x32xf32>
    %2 = tpu.matmul %0, %1, %cst {dimension_numbers = #tpu.dot_dimension_numbers<[1], [0], [0], [1], [0, 0, 1, 1], [], []>} : vector<56x25xf32>, vector<25x32xf32>, vector<56x32xf32> -> vector<56x32xf32>
    %3 = math.tanh %2 : vector<56x32xf32>
    %c0_3 = arith.constant 0 : index
    %c0_4 = arith.constant 0 : index
    %4 = vector.load %arg2[%c0_3, %c0_4] : memref<2x56xf32, #tpu.memory_space<vmem>>, vector<2x56xf32>
    %cst_5 = arith.constant dense<0.000000e+00> : vector<2x32xf32>
    %5 = tpu.matmul %4, %3, %cst_5 {dimension_numbers = #tpu.dot_dimension_numbers<[1], [0], [0], [1], [0, 0, 1, 1], [], []>} : vector<2x56xf32>, vector<56x32xf32>, vector<2x32xf32> -> vector<2x32xf32>
    %c0_6 = arith.constant 0 : index
    %c0_7 = arith.constant 0 : index
    %6 = vector.load %arg3[%c0_6, %c0_7] : memref<2x32xf32, #tpu.memory_space<vmem>>, vector<2x32xf32>
    tpu.vector_store %arg3[%c0_6, %c0_7], %5 {strides = array<i32>} : memref<2x32xf32, #tpu.memory_space<vmem>>, vector<2x32xf32>,
    return
  }
}

</mosaic_0001>

<llo_original>
// kernel: tpu_custom_call.1
$region0: #{tpu_custom_call.1}
  #allocation0 [shape = 'u32[]', space=smem, size = 0x4, offset = 0x4, fixed_abs, tag = 'smem constant byte address 0x4 - core index']
  #allocation1 [shape = 'u32[144,128]{1,0:T(1,128)}', space=vmem, size = 0x12000, scoped, tag = 'internal scratch']
  %s0 = inlined_call_operand.vmem [shape: f32[56,25], index: 0, kind: input, shape index: {}]
  %s1 = inlined_call_operand.vmem [shape: f32[25,32], index: 1, kind: input, shape index: {}]
  %s2 = inlined_call_operand.vmem [shape: f32[2,56], index: 2, kind: input, shape index: {}]
  %s3 = inlined_call_operand.hbm [shape: f32[2,32], index: 3, kind: output, shape index: {}]
  %s4 = sld [smem:[#allocation0]]
  $region22: #{tpu_custom_call.1} parent=0
    _
  %s6 = ssub.s32 1, %s4
  %s7 = scalar_select 0, %s6, %s4
  $region1: #{tpu_custom_call.1} parent=0
    #allocation2 [shape = 'u8[1024]{0}', space=vmem, size = 0x400, scoped, tag = 'output window, operand 0, single buffered']
    #allocation3 [shape = 's32[1]{0}', space=sflag, size = 0x4, scoped, tag = 'scoped memory for tpu_custom_call.1']
    %8 = vsyncpa [#allocation3], 0
    // Predicated region
    $region2: #{tpu_custom_call.1} parent=1 // pred_check
      _
    $region3: #{tpu_custom_call.1} parent=1 // pred_check_branch
      %10 = sbr.rel (0) target = $region5
    $region4: #{tpu_custom_call.1} parent=1 // pred_region
      _
    $region5: #{tpu_custom_call.1} parent=1 // pred_fallthru
      _
    // Predicated region
    $region6: #{tpu_custom_call.1} parent=1 // pred_check
      _
    $region7: #{tpu_custom_call.1} parent=1 // pred_check_branch
      %12 = sbr.rel (0) target = $region9
    $region8: #{tpu_custom_call.1} parent=1 // pred_region
      _
    $region9: #{tpu_custom_call.1} parent=1 // pred_fallthru
      _
    // Predicated region
    $region10: #{tpu_custom_call.1} parent=1 // pred_check
      _
    $region11: #{tpu_custom_call.1} parent=1 // pred_check_branch
      %14 = sbr.rel (0) target = $region13
    $region12: #{tpu_custom_call.1} parent=1 // pred_region
      _
    $region13: #{tpu_custom_call.1} parent=1 // pred_fallthru
      _
    %v15 = vld [vmem:[%s0] sm:$0xff]
    %v16 = vld [vmem:[%s0 + $0x8] sm:$0xff]
    %v17 = vld [vmem:[%s0 + $0x10] sm:$0xff]
    %v18 = vld [vmem:[%s0 + $0x18] sm:$0xff]
    %v19 = vld [vmem:[%s0 + $0x20] sm:$0xff]
    %v20 = vld [vmem:[%s0 + $0x28] sm:$0xff]
    %v21 = vld [vmem:[%s0 + $0x30] sm:$0xff]
    %v22 = vld [vmem:[%s1] sm:$0xff]
    %v23 = vld [vmem:[%s1 + $0x8] sm:$0xff]
    %v24 = vld [vmem:[%s1 + $0x10] sm:$0xff]
    %v25 = vld [vmem:[%s1 + $0x18] sm:$0x1]
    %vm26 = vcmask 203776
    %v28 = vsel %vm26, %v15, 0
    %v31 = vsel %vm26, %v16, 0
    %v34 = vsel %vm26, %v17, 0
    %v37 = vsel %vm26, %v18, 0
    %v40 = vsel %vm26, %v19, 0
    %v43 = vsel %vm26, %v20, 0
    %v46 = vsel %vm26, %v21, 0
    %vm48 = vcmask 1040384
    %v50 = vsel %vm48, %v25, 0
    %52 = vmatprep.subr.mxu0 0.0
    %53 = vmatpush1.msra.mxu0 %v22
    %54 = vmatprep.subr.mxu0 0.0
    %55 = vmatpush1.msra.mxu0 %v23
    %56 = vmatprep.subr.mxu0 0.0
    %57 = vmatpush1.msra.mxu0 %v24
    %58 = vmatprep.subr.mxu0 0.0
    %59 = vmatpush1.msra.mxu0 %v50
    %60 = vmatprep.subr.mxu0 0.0
    %61 = vmatpush1.msra.mxu0 0.0
    %62 = vmatprep.subr.mxu0 0.0
    %63 = vmatpush1.msra.mxu0 0.0
    %64 = vmatprep.subr.mxu0 0.0
    %65 = vmatpush1.msra.mxu0 0.0
    %66 = vmatprep.subr.mxu0 0.0
    %67 = vmatpush1.msra.mxu0 0.0
    %68 = vmatprep.subr.mxu0 0.0
    %69 = vmatpush1.msra.mxu0 0.0
    %70 = vmatprep.subr.mxu0 0.0
    %71 = vmatpush1.msra.mxu0 0.0
    %72 = vmatprep.subr.mxu0 0.0
    %73 = vmatpush1.msra.mxu0 0.0
    %74 = vmatprep.subr.mxu0 0.0
    %75 = vmatpush1.msra.mxu0 0.0
    %76 = vmatprep.subr.mxu0 0.0
    %77 = vmatpush1.msra.mxu0 0.0
    %78 = vmatprep.subr.mxu0 0.0
    %79 = vmatpush1.msra.mxu0 0.0
    %80 = vmatprep.subr.mxu0 0.0
    %81 = vmatpush1.msra.mxu0 0.0
    %82 = vmatprep.subr.mxu0 0.0
    %83 = vmatpush1.msra.mxu0 0.0
    %84 = vmatprep.subr.mxu0 0.0
    %85 = vmatpush1.msra.mxu0 0.0
    %86 = vmatprep.subr.mxu0 0.0
    %87 = vmatpush1.msra.mxu0 0.0
    %88 = vmatprep.subr.mxu0 0.0
    %89 = vmatpush1.msra.mxu0 0.0
    %90 = vmatprep.subr.mxu0 0.0
    %91 = vmatpush1.msra.mxu0 0.0
    %92 = vmatprep.subr.mxu0 0.0
    %93 = vmatpush1.msra.mxu0 0.0
    %94 = vmatprep.subr.mxu0 0.0
    %95 = vmatpush1.msra.mxu0 0.0
    %96 = vmatprep.subr.mxu0 0.0
    %97 = vmatpush1.msra.mxu0 0.0
    %98 = vmatprep.subr.mxu0 0.0
    %99 = vmatpush1.msra.mxu0 0.0
    %100 = vmatprep.subr.mxu0 0.0
    %101 = vmatpush1.msra.mxu0 0.0
    %102 = vmatprep.subr.mxu0 0.0
    %103 = vmatpush1.msra.mxu0 0.0
    %104 = vmatprep.subr.mxu0 0.0
    %105 = vmatpush1.msra.mxu0 0.0
    %106 = vmatprep.subr.mxu0 0.0
    %107 = vmatpush1.msra.mxu0 0.0
    %108 = vmatprep.subr.mxu0 0.0
    %109 = vmatpush1.msra.mxu0 0.0
    %110 = vmatprep.subr.mxu0 0.0
    %111 = vmatpush1.msra.mxu0 0.0
    %112 = vmatprep.subr.mxu0 0.0
    %113 = vmatpush1.msra.mxu0 0.0
    %114 = vmatprep.subr.mxu0 0.0
    %115 = vmatpush1.msra.mxu0 0.0
    %116 = vmatprep.mubr.f32.mxu0 0.0
    %117 = vmatmul.mubr.f32.gmra.mrb[0].mxu0 %v28
    %v118 = vpop.f32.mrb[0].mxu0
    %v119 = vadd.f32 0.0, %v118
    %v120 = vpop.f32.mrb[0].mxu0
    %121 = vmatprep.mubr.f32.mxu0 0.0
    %122 = vmatmul.mubr.f32.gmra.mrb[0].mxu0 %v31
    %v123 = vpop.f32.mrb[0].mxu0
    %v124 = vadd.f32 0.0, %v123
    %v125 = vpop.f32.mrb[0].mxu0
    %126 = vmatprep.mubr.f32.mxu0 0.0
    %127 = vmatmul.mubr.f32.gmra.mrb[0].mxu0 %v34
    %v128 = vpop.f32.mrb[0].mxu0
    %v129 = vadd.f32 0.0, %v128
    %v130 = vpop.f32.mrb[0].mxu0
    %131 = vmatprep.mubr.f32.mxu0 0.0
    %132 = vmatmul.mubr.f32.gmra.mrb[0].mxu0 %v37
    %v133 = vpop.f32.mrb[0].mxu0
    %v134 = vadd.f32 0.0, %v133
    %v135 = vpop.f32.mrb[0].mxu0
    %136 = vmatprep.mubr.f32.mxu0 0.0
    %137 = vmatmul.mubr.f32.gmra.mrb[0].mxu0 %v40
    %v138 = vpop.f32.mrb[0].mxu0
    %v139 = vadd.f32 0.0, %v138
    %v140 = vpop.f32.mrb[0].mxu0
    %141 = vmatprep.mubr.f32.mxu0 0.0
    %142 = vmatmul.mubr.f32.gmra.mrb[0].mxu0 %v43
    %v143 = vpop.f32.mrb[0].mxu0
    %v144 = vadd.f32 0.0, %v143
    %v145 = vpop.f32.mrb[0].mxu0
    %146 = vmatprep.mubr.f32.mxu0 0.0
    %147 = vmatmul.mubr.f32.gmra.mrb[0].mxu0 %v46
    %v148 = vpop.f32.mrb[0].mxu0
    %v149 = vadd.f32 0.0, %v148
    %v150 = vpop.f32.mrb[0].mxu0
    %151 = vdwg.mxu0
    %v152 = vtanh.pop %v119
    %v153 = vtanh.pop %v124
    %v154 = vtanh.pop %v129
    %v155 = vtanh.pop %v134
    %v156 = vtanh.pop %v139
    %v157 = vtanh.pop %v144
    %v158 = vtanh.pop %v149
    %v159 = vld [vmem:[%s2] sm:$0x3]
    %vm160 = vcmask 457728
    %v162 = vsel %vm160, %v159, 0
    %164 = vmatprep.subr.mxu0 0.0
    %165 = vmatpush1.msra.mxu0 %v152
    %166 = vmatprep.subr.mxu0 0.0
    %167 = vmatpush1.msra.mxu0 %v153
    %168 = vmatprep.subr.mxu0 0.0
    %169 = vmatpush1.msra.mxu0 %v154
    %170 = vmatprep.subr.mxu0 0.0
    %171 = vmatpush1.msra.mxu0 %v155
    %172 = vmatprep.subr.mxu0 0.0
    %173 = vmatpush1.msra.mxu0 %v156
    %174 = vmatprep.subr.mxu0 0.0
    %175 = vmatpush1.msra.mxu0 %v157
    %176 = vmatprep.subr.mxu0 0.0
    %177 = vmatpush1.msra.mxu0 %v158
    %178 = vmatprep.subr.mxu0 0.0
    %179 = vmatpush1.msra.mxu0 0.0
    %180 = vmatprep.subr.mxu0 0.0
    %181 = vmatpush1.msra.mxu0 0.0
    %182 = vmatprep.subr.mxu0 0.0
    %183 = vmatpush1.msra.mxu0 0.0
    %184 = vmatprep.subr.mxu0 0.0
    %185 = vmatpush1.msra.mxu0 0.0
    %186 = vmatprep.subr.mxu0 0.0
    %187 = vmatpush1.msra.mxu0 0.0
    %188 = vmatprep.subr.mxu0 0.0
    %189 = vmatpush1.msra.mxu0 0.0
    %190 = vmatprep.subr.mxu0 0.0
    %191 = vmatpush1.msra.mxu0 0.0
    %192 = vmatprep.subr.mxu0 0.0
    %193 = vmatpush1.msra.mxu0 0.0
    %194 = vmatprep.subr.mxu0 0.0
    %195 = vmatpush1.msra.mxu0 0.0
    %196 = vmatprep.subr.mxu0 0.0
    %197 = vmatpush1.msra.mxu0 0.0
    %198 = vmatprep.subr.mxu0 0.0
    %199 = vmatpush1.msra.mxu0 0.0
    %200 = vmatprep.subr.mxu0 0.0
    %201 = vmatpush1.msra.mxu0 0.0
    %202 = vmatprep.subr.mxu0 0.0
    %203 = vmatpush1.msra.mxu0 0.0
    %204 = vmatprep.subr.mxu0 0.0
    %205 = vmatpush1.msra.mxu0 0.0
    %206 = vmatprep.subr.mxu0 0.0
    %207 = vmatpush1.msra.mxu0 0.0
    %208 = vmatprep.subr.mxu0 0.0
    %209 = vmatpush1.msra.mxu0 0.0
    %210 = vmatprep.subr.mxu0 0.0
    %211 = vmatpush1.msra.mxu0 0.0
    %212 = vmatprep.subr.mxu0 0.0
    %213 = vmatpush1.msra.mxu0 0.0
    %214 = vmatprep.subr.mxu0 0.0
    %215 = vmatpush1.msra.mxu0 0.0
    %216 = vmatprep.subr.mxu0 0.0
    %217 = vmatpush1.msra.mxu0 0.0
    %218 = vmatprep.subr.mxu0 0.0
    %219 = vmatpush1.msra.mxu0 0.0
    %220 = vmatprep.subr.mxu0 0.0
    %221 = vmatpush1.msra.mxu0 0.0
    %222 = vmatprep.subr.mxu0 0.0
    %223 = vmatpush1.msra.mxu0 0.0
    %224 = vmatprep.subr.mxu0 0.0
    %225 = vmatpush1.msra.mxu0 0.0
    %226 = vmatprep.subr.mxu0 0.0
    %227 = vmatpush1.msra.mxu0 0.0
    %228 = vmatprep.mubr.f32.mxu0 0.0
    %229 = vmatmul.mubr.f32.gmra.mrb[0].mxu0 %v162
    %v230 = vpop.f32.mrb[0].mxu0
    %v231 = vadd.f32 0.0, %v230
    %v232 = vpop.f32.mrb[0].mxu0
    %233 = vdwg.mxu0
    %vm234 = vcmask 254976
    %235 = vst.msk [vmem:[#allocation2] sm:$0x3] %vm234, %v231
    // Predicated region
    $region14: #{tpu_custom_call.1} parent=1 // pred_check
      _
    $region15: #{tpu_custom_call.1} parent=1 // pred_check_branch
      %237 = sbr.rel (0) target = $region17
    $region16: #{tpu_custom_call.1} parent=1 // pred_region
      %s239 = ssub.s32 32, 32
      %240 = vsyncadd [#allocation3], %s239
      %s242 = sshll.u32 [#allocation2], 4
      %s243 = int_to_ptr.vmem [resolvable:$true] %s242
      %245 = dma.vmem_to_hbm [thread:$0]  %s243, 32, %s3, [#allocation3]
    $region17: #{tpu_custom_call.1} parent=1 // pred_fallthru
      _
    // Predicated region
    $region18: #{tpu_custom_call.1} parent=1 // pred_check
      _
    $region19: #{tpu_custom_call.1} parent=1 // pred_check_branch
      %247 = sbr.rel (0) target = $region21
    $region20: #{tpu_custom_call.1} parent=1 // pred_region
      %248 = dma.done [#allocation3], 32
    $region21: #{tpu_custom_call.1} parent=1 // pred_fallthru
      _
    %249 = vsyncpa [#allocation3], 1

</llo_original>
